<compile_context>
chip_gen: v7x
topology: tpu7x:2x2x1
jax: 0.10.0
libtpu: 0.0.40
codegen_flags: <defaults>
</compile_context>

<pallas_src>
import jax
import jax.numpy as jnp
from jax.experimental import pallas as pl
from jax.experimental.pallas import tpu as pltpu


def identity_map(x: jax.Array, *args, **kwargs) -> jax.Array:
    """Pallas-facing IdentityMap.forward(x) -> x.

    Extra *args/**kwargs are ignored (as in the torch module).  Identity needs
    zero HBM traffic, so the fast path simply returns x.
    """
    del args, kwargs
    return x


def _identity_dma_kernel(x_hbm, o_hbm, sem):
    # Single whole-array HBM->HBM DMA; no VMEM staging, no grid.
    cp = pltpu.make_async_copy(x_hbm, o_hbm, sem)
    cp.start()
    cp.wait()


def identity_copy_pallas(x: jax.Array) -> jax.Array:
    """Materialized identity: copies x into a fresh buffer via one DMA.

    Used only when a distinct output buffer is required; otherwise prefer
    identity_map() which is free.  Any shape/dtype is accepted (ragged sizes
    need no masking because the DMA copies the full buffer).
    """
    if x.size == 0:
        # Nothing to copy; returning x is exact and free.
        return x

    return pl.pallas_call(
        _identity_dma_kernel,
        out_shape=jax.ShapeDtypeStruct(x.shape, x.dtype),
        in_specs=[pl.BlockSpec(memory_space=pl.ANY)],
        out_specs=pl.BlockSpec(memory_space=pl.ANY),
        scratch_shapes=[pltpu.SemaphoreType.DMA(())],
    )(x)


def identity_map_config():
    # Mirrors the torch module's `config` property.
    return {"mm_projector_type": "identity"}


if __name__ == "__main__":
    key = jax.random.PRNGKey(0)

    # (batch, seq, hidden) consistent with a vision->LLM projector input.
    x = jax.random.normal(key, (2, 8, 32), dtype=jnp.float32)

    # Fast path: optimal identity (no kernel, no traffic).
    y_fast = identity_map(x, "extra_positional", some_kw=123)
    assert y_fast.shape == x.shape and y_fast.dtype == x.dtype
    assert bool(jnp.array_equal(y_fast, x)), "fast-path identity mismatch"

    # Kernel path: single HBM->HBM DMA copy.
    y = jax.block_until_ready(identity_copy_pallas(x))
    assert y.shape == x.shape and y.dtype == x.dtype, (y.shape, y.dtype)
    assert bool(jnp.array_equal(y, x)), "identity DMA kernel mismatch (f32)"

    # Ragged / non-128-divisible shape and sub-32-bit dtype: exercises the
    # no-padding, no-masking property of the whole-buffer DMA.
    xb = jax.random.normal(jax.random.PRNGKey(0), (3, 7, 33), dtype=jnp.bfloat16)
    yb = jax.block_until_ready(identity_copy_pallas(xb))
    assert yb.shape == xb.shape and yb.dtype == xb.dtype
    assert bool(jnp.array_equal(yb, xb)), "identity DMA kernel mismatch (bf16)"

    # Larger shape: still one DMA, no grid bookkeeping.
    xl = jax.random.normal(jax.random.PRNGKey(0), (4, 64, 1024), dtype=jnp.float32)
    yl = jax.block_until_ready(identity_copy_pallas(xl))
    assert yl.shape == xl.shape and yl.dtype == xl.dtype
    assert bool(jnp.array_equal(yl, xl)), "identity DMA kernel mismatch (large)"

    assert identity_map_config() == {"mm_projector_type": "identity"}
    print("KERNEL_OK")
</pallas_src>

<mosaic_0001>
module attributes {stable_mosaic.version = 11 : i64} {
  func.func @_identity_dma_kernel(%arg0: memref<2x8x32xf32, #tpu.memory_space<any>>, %arg1: memref<2x8x32xf32, #tpu.memory_space<any>>, %arg2: memref<!tpu.dma_semaphore, #tpu.memory_space<semaphore_mem>>) attributes {dimension_semantics = [], scalar_prefetch = 0 : i64, scratch_operands = 1 : i64, tpu.core_type = #tpu.core_type<tc>} {
    tpu.enqueue_dma source(%arg0 : memref<2x8x32xf32, #tpu.memory_space<any>>) target(%arg1 : memref<2x8x32xf32, #tpu.memory_space<any>>) target_semaphore(%arg2 : memref<!tpu.dma_semaphore, #tpu.memory_space<semaphore_mem>>)
    tpu.wait_dma2 semaphore(%arg2 : memref<!tpu.dma_semaphore, #tpu.memory_space<semaphore_mem>>) src(%arg0 : memref<2x8x32xf32, #tpu.memory_space<any>>) dst(%arg1 : memref<2x8x32xf32, #tpu.memory_space<any>>)
    return
  }
}

</mosaic_0001>

<llo_original>
// kernel: tpu_custom_call.1
$region0: #{tpu_custom_call.1}
  #allocation0 [shape = 'u32[]', space=smem, size = 0x4, offset = 0x4, fixed_abs, tag = 'smem constant byte address 0x4 - core index']
  #allocation1 [shape = 'u32[144,128]{1,0:T(1,128)}', space=vmem, size = 0x12000, scoped, tag = 'internal scratch']
  #allocation2 [shape = 's32[1]{0}', space=sflag, size = 0x4, scoped, tag = 'scratch operand']
  #allocation3 [shape = 's32[]', space=sflag, size = 0x4, offset = 0, fixed_abs, tag = 'sflag constant byte address 0x0 - dummy sync flag']
  #allocation4 [shape = 'u32[0]{0}', space=smem, size = 0, offset = 0, fixed_abs, tag = 'smem constant byte address 0x0 - null']
  %s0 = inlined_call_operand.hbm [shape: f32[2,8,32], index: 0, kind: input, shape index: {}]
  %s1 = inlined_call_operand.hbm [shape: f32[2,8,32], index: 1, kind: output, shape index: {}]
  %s2 = sld [smem:[#allocation0]]
  $region2: #{tpu_custom_call.1} parent=0
    _
  %s4 = ssub.s32 1, %s2
  %s5 = scalar_select 0, %s4, %s2
  %s7 = sshll.u32 1, 14
  %s8 = sxor.u32 4294967295, %s7
  %s11 = sshll.u32 3, 24
  %s12 = sxor.u32 4294967295, %s11
  %s13 = sand.u32 0, %s12
  %s15 = sor.u32 %s13, 0
  %18 = dma.general %s0, 256, %s1, [#allocation2], [#allocation3], [#allocation4], %s15, 0
  %s19 = smul.u32 2, 8
  %s20 = smul.u32 %s19, 1
  %s21 = sshll.u32 %s20, 4
  %22 = dma.done [#allocation2], %s21
  %23 = vsyncmov [#allocation2]
  %s24 = vpop.sfrf %23
  %p25 = scmp.eq.s32.totalorder %s24, 0
  %p26 = pneg %p25
  %28 = shalt.err (%p26)

</llo_original>
